<compile_context>
chip_gen: v5e
topology: v5e:2x2
jax: 0.10.0
libtpu: 0.0.40
codegen_flags: <defaults>
</compile_context>

<pallas_src>
import jax
import jax.numpy as jnp
from jax.experimental import pallas as pl
from jax.experimental.pallas import tpu as pltpu

_MIB = 1024 * 1024


def _vmem_capacity_bytes():
    try:
        return int(pltpu.get_tpu_info().vmem_capacity_bytes)
    except Exception:
        return 64 * _MIB  # conservative fallback (v7x per-TensorCore VMEM)


def _pick_tile(dim, preferred, align):
    """Largest divisor of `dim` <= preferred, preferring multiples of `align`.

    Never falls back to the full dimension for non-divisible shapes (the old
    behavior could silently create one giant, un-pipelined block).
    """
    if dim <= preferred:
        return dim
    best_any = None
    for t in range(min(preferred, dim), 0, -1):
        if dim % t == 0:
            if t % align == 0:
                return t
            if best_any is None:
                best_any = t
    # TODO(synk): pad/mask in the wrapper instead of degrading to a tiny
    # unaligned divisor for pathological (prime-ish) dims.
    return best_any if best_any is not None else 1


def _resident_vmem_bytes(tb, d, h, weight_bytes):
    io_blocks = 2 * (tb * d * 4 + tb * d * 4 + tb * 4)        # x, dec, pen (dbl-buf)
    weights = 2 * (weight_bytes + h * 4 + d * 4)              # weights + biases
    temps = tb * h * 4 + tb * d * 4 + tb * d * 2              # enc, part, x cast
    return io_blocks + weights + temps


def _tiled_vmem_bytes(tb, th, d, w_itemsize):
    io_blocks = 2 * (tb * d * 4 + tb * d * 4 + tb * 4)
    weights = 2 * (d * th * w_itemsize + th * 4 + th * d * w_itemsize + d * 4)
    temps = tb * th * 4 + tb * d * 4 + tb * d * 2
    return io_blocks + weights + temps


def _sae_resident_kernel(x_ref, w_enc_ref, b_enc_ref, w_dec_ref, b_dec_ref,
                         dec_ref, pen_ref):
    """One batch tile with VMEM-resident weights: full hidden dim in one pass."""
    xb = x_ref[...].astype(w_enc_ref.dtype)                    # f32 -> bf16 (VPU)
    enc = jnp.dot(xb, w_enc_ref[...], preferred_element_type=jnp.float32)
    enc = jnp.maximum(enc + b_enc_ref[...], 0.0)               # f32 bias + ReLU
    pen_ref[...] = jnp.sum(enc, axis=1, keepdims=True)         # (TB, 1) f32
    dec_ref[...] = b_dec_ref[...] + jnp.dot(
        enc.astype(w_dec_ref.dtype), w_dec_ref[...],
        preferred_element_type=jnp.float32)


def _sae_tiled_kernel(x_ref, w_enc_ref, b_enc_ref, w_dec_ref, b_dec_ref,
                      dec_ref, pen_ref):
    """(batch tile, hidden tile) grid step; accumulates straight into the
    resident f32 output blocks across the hidden (reduction) axis."""
    h = pl.program_id(1)

    xb = x_ref[...].astype(w_enc_ref.dtype)                    # f32 -> bf16 (VPU)
    enc = jnp.dot(xb, w_enc_ref[...], preferred_element_type=jnp.float32)
    enc = jnp.maximum(enc + b_enc_ref[...], 0.0)               # f32 bias + ReLU
    row_sum = jnp.sum(enc, axis=1, keepdims=True)              # (TB, 1) f32
    part = jnp.dot(enc.astype(w_dec_ref.dtype), w_dec_ref[...],
                   preferred_element_type=jnp.float32)         # (TB, D) f32

    @pl.when(h == 0)
    def _init():
        dec_ref[...] = b_dec_ref[...] + part                   # bias added once
        pen_ref[...] = row_sum

    @pl.when(h != 0)
    def _accumulate():
        dec_ref[...] += part
        pen_ref[...] += row_sum


def prepare_params(w_enc, b_enc, w_dec, b_dec, *, compute_dtype=jnp.bfloat16):
    """One-time layout/dtype prep. Call OUTSIDE the hot/training loop.

    w_enc: [hidden, in] (PyTorch nn.Linear), w_dec: [in, hidden]. Weights are
    transposed to row-major matmul layout and cast to the MXU input dtype;
    biases stay f32 as (1, dim) rows.
    """
    # TODO(synk): optional int8 (v5e/v6e) / fp8 (v7x) weight storage with
    # per-tile f32 scales to halve weight HBM traffic.
    return dict(
        w_enc_t=jnp.asarray(w_enc).astype(compute_dtype).T,          # [in, hid]
        b_enc=jnp.asarray(b_enc, jnp.float32).reshape(1, -1),        # [1, hid]
        w_dec_t=jnp.asarray(w_dec).astype(compute_dtype).T,          # [hid, in]
        b_dec=jnp.asarray(b_dec, jnp.float32).reshape(1, -1),        # [1, in]
    )


def sparse_autoencoder_forward(x, params, sparsity_weight=0.1, *,
                               tb=512, th=512, force_tiled=False):
    """x: [B, input_dim] f32. Returns (decoded [B, input_dim] f32, penalty scalar f32)."""
    w_enc_t, b_enc = params["w_enc_t"], params["b_enc"]
    w_dec_t, b_dec = params["w_dec_t"], params["b_dec"]

    B, input_dim = x.shape
    hidden_dim = w_enc_t.shape[1]
    assert w_enc_t.shape == (input_dim, hidden_dim)
    assert w_dec_t.shape == (hidden_dim, input_dim)

    x = jnp.asarray(x, jnp.float32)            # stays f32; cast inside the kernel

    vmem_cap = _vmem_capacity_bytes()
    w_itemsize = jnp.dtype(w_enc_t.dtype).itemsize
    weight_bytes = (w_enc_t.size + w_dec_t.size) * w_itemsize

    # Batch tile: multiple of 8; when B is large, keep >= 2 batch tiles so the
    # "parallel" batch axis feeds both v7x TensorCores.
    TB = _pick_tile(B, tb, 8)
    if B // TB == 1 and B >= 256:
        TB = _pick_tile(B, max(B // 2, 8), 8)

    # Resident-weights path when the (double-buffered) weights fit comfortably.
    resident = (not force_tiled) and (2 * weight_bytes <= int(0.35 * vmem_cap))
    if resident:
        budget = int(0.7 * vmem_cap)
        while (_resident_vmem_bytes(TB, input_dim, hidden_dim, weight_bytes)
               > budget and TB > 8):
            new_tb = _pick_tile(B, max(TB // 2, 8), 8)
            if new_tb == TB:
                break
            TB = new_tb
        if _resident_vmem_bytes(TB, input_dim, hidden_dim, weight_bytes) > budget:
            resident = False
    nb = B // TB

    flops = 4 * B * input_dim * hidden_dim     # two matmuls, forward only
    out_shape = (
        jax.ShapeDtypeStruct((B, input_dim), jnp.float32),
        jax.ShapeDtypeStruct((B, 1), jnp.float32),
    )

    # TODO(synk): add input_dim (D) tiling for very large D (>8K) so the x /
    # decoded / weight blocks don't all scale with the full input_dim.
    if resident:
        kernel = _sae_resident_kernel
        grid = (nb,)
        in_specs = [
            pl.BlockSpec((TB, input_dim), lambda b: (b, 0)),            # x
            pl.BlockSpec((input_dim, hidden_dim), lambda b: (0, 0)),    # W_enc^T
            pl.BlockSpec((1, hidden_dim), lambda b: (0, 0)),            # b_enc
            pl.BlockSpec((hidden_dim, input_dim), lambda b: (0, 0)),    # W_dec^T
            pl.BlockSpec((1, input_dim), lambda b: (0, 0)),             # b_dec
        ]
        out_specs = (
            pl.BlockSpec((TB, input_dim), lambda b: (b, 0)),
            pl.BlockSpec((TB, 1), lambda b: (b, 0)),
        )
        dimension_semantics = ("parallel",)
        needed = _resident_vmem_bytes(TB, input_dim, hidden_dim, weight_bytes)
        weight_stream_factor = 1                  # weights cross HBM once
    else:
        TH = _pick_tile(hidden_dim, th, 128)
        nh = hidden_dim // TH
        kernel = _sae_tiled_kernel
        grid = (nb, nh)
        in_specs = [
            pl.BlockSpec((TB, input_dim), lambda b, h: (b, 0)),         # x (resident)
            pl.BlockSpec((input_dim, TH), lambda b, h: (0, h)),         # W_enc^T tile
            pl.BlockSpec((1, TH), lambda b, h: (0, h)),                 # b_enc tile
            pl.BlockSpec((TH, input_dim), lambda b, h: (h, 0)),         # W_dec^T tile
            pl.BlockSpec((1, input_dim), lambda b, h: (0, 0)),          # b_dec
        ]
        out_specs = (
            pl.BlockSpec((TB, input_dim), lambda b, h: (b, 0)),         # resident acc
            pl.BlockSpec((TB, 1), lambda b, h: (b, 0)),
        )
        dimension_semantics = ("parallel", "arbitrary")
        needed = _tiled_vmem_bytes(TB, TH, input_dim, w_itemsize)
        weight_stream_factor = nb                 # weight tiles re-streamed per batch tile

    vmem_limit = int(min(max(needed + 4 * _MIB, 32 * _MIB), (3 * vmem_cap) // 4))

    bytes_accessed = int(x.size * 4
                         + weight_stream_factor * weight_bytes
                         + (b_enc.size + b_dec.size) * 4
                         + B * input_dim * 4 + B * 4)

    grid_spec = pltpu.PrefetchScalarGridSpec(
        num_scalar_prefetch=0,
        grid=grid,
        in_specs=in_specs,
        out_specs=out_specs,
    )

    decoded, pen_rows = pl.pallas_call(
        kernel,
        out_shape=out_shape,
        grid_spec=grid_spec,
        compiler_params=pltpu.CompilerParams(
            dimension_semantics=dimension_semantics,
            vmem_limit_bytes=vmem_limit,
        ),
        cost_estimate=pl.CostEstimate(
            flops=flops, transcendentals=0, bytes_accessed=bytes_accessed),
    )(x, w_enc_t, b_enc, w_dec_t, b_dec)

    # torch.mean(encoded) over all B*hidden elements, scaled by sparsity_weight.
    penalty = sparsity_weight * (jnp.sum(pen_rows) / (B * hidden_dim))
    return decoded, penalty


def _reference_forward(x, w_enc, b_enc, w_dec, b_dec, sparsity_weight=0.1):
    enc = jnp.maximum(x @ w_enc.T + b_enc, 0.0)
    pen = sparsity_weight * jnp.mean(enc)
    dec = enc @ w_dec.T + b_dec
    return dec, pen


if __name__ == "__main__":
    key = jax.random.PRNGKey(0)
    B, input_dim, hidden_dim = 16, 128, 256
    sparsity_weight = 0.1

    k_x, k_we, k_be, k_wd, k_bd = jax.random.split(key, 5)
    x = jax.random.normal(k_x, (B, input_dim), dtype=jnp.float32)

    # PyTorch nn.Linear layout/init: weight [out, in], bias [out].
    bound_e = 1.0 / (input_dim ** 0.5)
    w_enc = jax.random.uniform(k_we, (hidden_dim, input_dim),
                               minval=-bound_e, maxval=bound_e, dtype=jnp.float32)
    b_enc = jax.random.uniform(k_be, (hidden_dim,),
                               minval=-bound_e, maxval=bound_e, dtype=jnp.float32)
    bound_d = 1.0 / (hidden_dim ** 0.5)
    w_dec = jax.random.uniform(k_wd, (input_dim, hidden_dim),
                               minval=-bound_d, maxval=bound_d, dtype=jnp.float32)
    b_dec = jax.random.uniform(k_bd, (input_dim,),
                               minval=-bound_d, maxval=bound_d, dtype=jnp.float32)

    params = prepare_params(w_enc, b_enc, w_dec, b_dec)
    dec_ref, pen_ref = _reference_forward(x, w_enc, b_enc, w_dec, b_dec,
                                          sparsity_weight)

    # Path 1: resident-weights kernel (weights fit easily at these shapes).
    dec_a, pen_a = sparse_autoencoder_forward(x, params, sparsity_weight)
    # Path 2: tiled kernel, forced, with small tiles so the grid is exercised
    # (grid = (2, 2)).
    dec_b, pen_b = sparse_autoencoder_forward(x, params, sparsity_weight,
                                              tb=8, th=128, force_tiled=True)
    jax.block_until_ready((dec_a, pen_a, dec_b, pen_b))

    # bf16 MXU inputs with f32 accumulation -> loose-ish tolerances vs f32 ref.
    for dec, pen in ((dec_a, pen_a), (dec_b, pen_b)):
        assert jnp.allclose(dec, dec_ref, atol=5e-2, rtol=5e-2), "decoded mismatch"
        assert jnp.allclose(pen, pen_ref, atol=5e-3, rtol=5e-2), "penalty mismatch"

    print("KERNEL_OK")
</pallas_src>

<mosaic_0001>
module attributes {stable_mosaic.version = 11 : i64} {
  func.func @_sae_resident_kernel(%arg0: i32, %arg1: memref<16x128xf32, #tpu.memory_space<vmem>>, %arg2: memref<128x256xbf16, #tpu.memory_space<vmem>>, %arg3: memref<1x256xf32, #tpu.memory_space<vmem>>, %arg4: memref<256x128xbf16, #tpu.memory_space<vmem>>, %arg5: memref<1x128xf32, #tpu.memory_space<vmem>>, %arg6: memref<16x128xf32, #tpu.memory_space<vmem>>, %arg7: memref<16x1xf32, #tpu.memory_space<vmem>>) attributes {dimension_semantics = [#tpu.dimension_semantics<parallel>], iteration_bounds = array<i64: 1>, scalar_prefetch = 0 : i64, scratch_operands = 0 : i64, tpu.core_type = #tpu.core_type<tc>, window_params = [{transform_indices = @transform_0, window_bounds = array<i64: 16, 128>}, {pipeline_mode = #tpu.pipeline_mode<synchronous>, transform_indices = @transform_1, window_bounds = array<i64: 128, 256>}, {pipeline_mode = #tpu.pipeline_mode<synchronous>, transform_indices = @transform_2, window_bounds = array<i64: 1, 256>}, {pipeline_mode = #tpu.pipeline_mode<synchronous>, transform_indices = @transform_3, window_bounds = array<i64: 256, 128>}, {pipeline_mode = #tpu.pipeline_mode<synchronous>, transform_indices = @transform_4, window_bounds = array<i64: 1, 128>}, {transform_indices = @transform_5, window_bounds = array<i64: 16, 128>}, {transform_indices = @transform_6, window_bounds = array<i64: 16, 1>}]} {
    %c0 = arith.constant 0 : index
    %c0_0 = arith.constant 0 : index
    %0 = vector.load %arg1[%c0, %c0_0] : memref<16x128xf32, #tpu.memory_space<vmem>>, vector<16x128xf32>
    %1 = arith.truncf %0 : vector<16x128xf32> to vector<16x128xbf16>
    %c0_1 = arith.constant 0 : index
    %c0_2 = arith.constant 0 : index
    %2 = vector.load %arg2[%c0_1, %c0_2] : memref<128x256xbf16, #tpu.memory_space<vmem>>, vector<128x256xbf16>
    %cst = arith.constant dense<0.000000e+00> : vector<16x256xf32>
    %3 = tpu.matmul %1, %2, %cst {dimension_numbers = #tpu.dot_dimension_numbers<[1], [0], [0], [1], [0, 0, 1, 1], [], []>} : vector<16x128xbf16>, vector<128x256xbf16>, vector<16x256xf32> -> vector<16x256xf32>
    %c0_3 = arith.constant 0 : index
    %c0_4 = arith.constant 0 : index
    %4 = vector.load %arg3[%c0_3, %c0_4] : memref<1x256xf32, #tpu.memory_space<vmem>>, vector<1x256xf32>
    %5 = vector.broadcast %4 : vector<1x256xf32> to vector<16x256xf32>
    %6 = arith.addf %3, %5 : vector<16x256xf32>
    %cst_5 = arith.constant 0.000000e+00 : f32
    %7 = vector.broadcast %cst_5 : f32 to vector<16x256xf32>
    %8 = arith.maximumf %6, %7 : vector<16x256xf32>
    %cst_6 = arith.constant dense<0.000000e+00> : vector<16xf32>
    %9 = vector.multi_reduction <add>, %8, %cst_6 [1] : vector<16x256xf32> to vector<16xf32>
    %10 = vector.shape_cast %9 : vector<16xf32> to vector<16x1xf32>
    %c0_7 = arith.constant 0 : index
    %c0_8 = arith.constant 0 : index
    %11 = vector.load %arg7[%c0_7, %c0_8] : memref<16x1xf32, #tpu.memory_space<vmem>>, vector<16x1xf32>
    tpu.vector_store %arg7[%c0_7, %c0_8], %10 {strides = array<i32>} : memref<16x1xf32, #tpu.memory_space<vmem>>, vector<16x1xf32>,
    %c0_9 = arith.constant 0 : index
    %c0_10 = arith.constant 0 : index
    %12 = vector.load %arg5[%c0_9, %c0_10] : memref<1x128xf32, #tpu.memory_space<vmem>>, vector<1x128xf32>
    %13 = arith.truncf %8 : vector<16x256xf32> to vector<16x256xbf16>
    %c0_11 = arith.constant 0 : index
    %c0_12 = arith.constant 0 : index
    %14 = vector.load %arg4[%c0_11, %c0_12] : memref<256x128xbf16, #tpu.memory_space<vmem>>, vector<256x128xbf16>
    %cst_13 = arith.constant dense<0.000000e+00> : vector<16x128xf32>
    %15 = tpu.matmul %13, %14, %cst_13 {dimension_numbers = #tpu.dot_dimension_numbers<[1], [0], [0], [1], [0, 0, 1, 1], [], []>} : vector<16x256xbf16>, vector<256x128xbf16>, vector<16x128xf32> -> vector<16x128xf32>
    %16 = vector.broadcast %12 : vector<1x128xf32> to vector<16x128xf32>
    %17 = arith.addf %16, %15 : vector<16x128xf32>
    %c0_14 = arith.constant 0 : index
    %c0_15 = arith.constant 0 : index
    %18 = vector.load %arg6[%c0_14, %c0_15] : memref<16x128xf32, #tpu.memory_space<vmem>>, vector<16x128xf32>
    tpu.vector_store %arg6[%c0_14, %c0_15], %17 {strides = array<i32>} : memref<16x128xf32, #tpu.memory_space<vmem>>, vector<16x128xf32>,
    return
  }
  func.func @transform_0(%arg0: i32) -> (i32, i32) {
    %c0_i32 = arith.constant 0 : i32
    %c0_i32_0 = arith.constant 0 : i32
    return %arg0, %c0_i32 : i32, i32
  }
  func.func @transform_1(%arg0: i32) -> (i32, i32) {
    %c0_i32 = arith.constant 0 : i32
    %c0_i32_0 = arith.constant 0 : i32
    %c0_i32_1 = arith.constant 0 : i32
    return %c0_i32, %c0_i32_0 : i32, i32
  }
  func.func @transform_2(%arg0: i32) -> (i32, i32) {
    %c0_i32 = arith.constant 0 : i32
    %c0_i32_0 = arith.constant 0 : i32
    %c0_i32_1 = arith.constant 0 : i32
    return %c0_i32, %c0_i32_0 : i32, i32
  }
  func.func @transform_3(%arg0: i32) -> (i32, i32) {
    %c0_i32 = arith.constant 0 : i32
    %c0_i32_0 = arith.constant 0 : i32
    %c0_i32_1 = arith.constant 0 : i32
    return %c0_i32, %c0_i32_0 : i32, i32
  }
  func.func @transform_4(%arg0: i32) -> (i32, i32) {
    %c0_i32 = arith.constant 0 : i32
    %c0_i32_0 = arith.constant 0 : i32
    %c0_i32_1 = arith.constant 0 : i32
    return %c0_i32, %c0_i32_0 : i32, i32
  }
  func.func @transform_5(%arg0: i32) -> (i32, i32) {
    %c0_i32 = arith.constant 0 : i32
    %c0_i32_0 = arith.constant 0 : i32
    return %arg0, %c0_i32 : i32, i32
  }
  func.func @transform_6(%arg0: i32) -> (i32, i32) {
    %c0_i32 = arith.constant 0 : i32
    %c0_i32_0 = arith.constant 0 : i32
    return %arg0, %c0_i32 : i32, i32
  }
}

</mosaic_0001>

<llo_original>
// kernel: tpu_custom_call.1
$region0: #{tpu_custom_call.1}
  #allocation0 [shape = 'u32[]', space=smem, size = 0x4, offset = 0x4, fixed_abs, tag = 'smem constant byte address 0x4 - core index']
  #allocation1 [shape = 'u32[72,128]{1,0:T(1,128)}', space=vmem, size = 0x9000, scoped, tag = 'internal scratch']
  %s0 = inlined_call_operand.hbm [shape: f32[16,128], index: 0, kind: input, shape index: {}]
  %s1 = inlined_call_operand.hbm [shape: bf16[128,256], index: 1, kind: input, shape index: {}]
  %s2 = inlined_call_operand.hbm [shape: f32[1,256], index: 2, kind: input, shape index: {}]
  %s3 = inlined_call_operand.hbm [shape: bf16[256,128], index: 3, kind: input, shape index: {}]
  %s4 = inlined_call_operand.vmem [shape: f32[1,128], index: 4, kind: input, shape index: {}]
  %s5 = inlined_call_operand.hbm [shape: f32[16,128], index: 5, kind: output, shape index: {0}]
  %s6 = inlined_call_operand.vmem [shape: f32[16,1], index: 6, kind: output, shape index: {1}]
  %7 = xla_tuple %s5, %s6
  %s8 = sld [smem:[#allocation0]]
  $region54: #{tpu_custom_call.1} parent=0
    _
  %s10 = ssub.s32 1, %s8
  %s11 = scalar_select 0, %s10, %s8
  $region1: #{tpu_custom_call.1} parent=0
    #allocation2 [shape = 'u8[8192]{0}', space=vmem, size = 0x2000, scoped, tag = 'input window, operand 0, single buffered']
    #allocation3 [shape = 's32[1]{0}', space=sflag, size = 0x4, scoped, tag = 'scoped memory for tpu_custom_call.1']
    #allocation4 [shape = 's32[1]{0}', space=sflag, size = 0x4, scoped, tag = 'scoped memory for tpu_custom_call.1']
    #allocation5 [shape = 'u8[65536]{0}', space=vmem, size = 0x10000, scoped, tag = 'input window, operand 1, single buffered']
    #allocation6 [shape = 's32[1]{0}', space=sflag, size = 0x4, scoped, tag = 'scoped memory for tpu_custom_call.1']
    #allocation7 [shape = 'u8[1024]{0}', space=vmem, size = 0x400, scoped, tag = 'input window, operand 2, single buffered']
    #allocation8 [shape = 'u8[65536]{0}', space=vmem, size = 0x10000, scoped, tag = 'input window, operand 3, single buffered']
    #allocation9 [shape = 's32[1]{0}', space=sflag, size = 0x4, scoped, tag = 'scoped memory for tpu_custom_call.1']
    #allocation10 [shape = 'u8[8192]{0}', space=vmem, size = 0x2000, scoped, tag = 'output window, operand 0, single buffered']
    %12 = vsyncpa [#allocation3], 0
    %13 = vsyncpa [#allocation6], 0
    %14 = vsyncpa [#allocation9], 0
    %15 = vsyncpa [#allocation4], 0
    // Predicated region
    $region2: #{tpu_custom_call.1} parent=1 // pred_check
      _
    $region3: #{tpu_custom_call.1} parent=1 // pred_check_branch
      %17 = sbr.rel (0) target = $region5
    $region4: #{tpu_custom_call.1} parent=1 // pred_region
      %19 = vsyncadd [#allocation3], 0
      %s20 = sshll.u32 %s0, 4
      %s21 = int_to_ptr.hbm [resolvable:$true] %s20
      %s22 = sshll.u32 [#allocation2], 4
      %s23 = int_to_ptr.vmem [resolvable:$true] %s22
      %28 = dma.hbm_to_vmem [thread:$0]  %s21, 256, %s23, [#allocation3], 128, 128, 8
    $region5: #{tpu_custom_call.1} parent=1 // pred_fallthru
      _
    // Predicated region
    $region6: #{tpu_custom_call.1} parent=1 // pred_check
      _
    $region7: #{tpu_custom_call.1} parent=1 // pred_check_branch
      %30 = sbr.rel (0) target = $region9
    $region8: #{tpu_custom_call.1} parent=1 // pred_region
      %32 = vsyncadd [#allocation6], 0
      %s33 = sshll.u32 %s1, 4
      %s34 = int_to_ptr.hbm [resolvable:$true] %s33
      %s35 = sshll.u32 [#allocation5], 4
      %s36 = int_to_ptr.vmem [resolvable:$true] %s35
      %41 = dma.hbm_to_vmem [thread:$0]  %s34, 2048, %s36, [#allocation6], 128, 128, 8
    $region9: #{tpu_custom_call.1} parent=1 // pred_fallthru
      _
    // Predicated region
    $region10: #{tpu_custom_call.1} parent=1 // pred_check
      _
    $region11: #{tpu_custom_call.1} parent=1 // pred_check_branch
      %43 = sbr.rel (0) target = $region13
    $region12: #{tpu_custom_call.1} parent=1 // pred_region
      %45 = vsyncadd [#allocation6], 0
      %s47 = sshll.u32 %s2, 4
      %s48 = int_to_ptr.hbm [resolvable:$true] %s47
      %s49 = sshll.u32 [#allocation7], 4
      %s50 = int_to_ptr.vmem [resolvable:$true] %s49
      %52 = dma.hbm_to_vmem [thread:$0]  %s48, 32, %s50, [#allocation6]
    $region13: #{tpu_custom_call.1} parent=1 // pred_fallthru
      _
    // Predicated region
    $region14: #{tpu_custom_call.1} parent=1 // pred_check
      _
    $region15: #{tpu_custom_call.1} parent=1 // pred_check_branch
      %54 = sbr.rel (0) target = $region17
    $region16: #{tpu_custom_call.1} parent=1 // pred_region
      %56 = vsyncadd [#allocation9], 0
      %s57 = sshll.u32 %s3, 4
      %s58 = int_to_ptr.hbm [resolvable:$true] %s57
      %s59 = sshll.u32 [#allocation8], 4
      %s60 = int_to_ptr.vmem [resolvable:$true] %s59
      %65 = dma.hbm_to_vmem [thread:$0]  %s58, 2048, %s60, [#allocation9], 64, 64, 4
    $region17: #{tpu_custom_call.1} parent=1 // pred_fallthru
      _
    // Predicated region
    $region18: #{tpu_custom_call.1} parent=1 // pred_check
      _
    $region19: #{tpu_custom_call.1} parent=1 // pred_check_branch
      %67 = sbr.rel (0) target = $region21
    $region20: #{tpu_custom_call.1} parent=1 // pred_region
      _
    $region21: #{tpu_custom_call.1} parent=1 // pred_fallthru
      _
    // Predicated region
    $region22: #{tpu_custom_call.1} parent=1 // pred_check
      _
    $region23: #{tpu_custom_call.1} parent=1 // pred_check_branch
      %69 = sbr.rel (0) target = $region25
    $region24: #{tpu_custom_call.1} parent=1 // pred_region
      %71 = dma.done [#allocation3], 256
    $region25: #{tpu_custom_call.1} parent=1 // pred_fallthru
      _
    // Predicated region
    $region26: #{tpu_custom_call.1} parent=1 // pred_check
      _
    $region27: #{tpu_custom_call.1} parent=1 // pred_check_branch
      %73 = sbr.rel (0) target = $region29
    $region28: #{tpu_custom_call.1} parent=1 // pred_region
      %75 = dma.done [#allocation6], 2048
    $region29: #{tpu_custom_call.1} parent=1 // pred_fallthru
      _
    // Predicated region
    $region30: #{tpu_custom_call.1} parent=1 // pred_check
      _
    $region31: #{tpu_custom_call.1} parent=1 // pred_check_branch
      %77 = sbr.rel (0) target = $region33
    $region32: #{tpu_custom_call.1} parent=1 // pred_region
      %79 = dma.done [#allocation6], 32
    $region33: #{tpu_custom_call.1} parent=1 // pred_fallthru
      _
    // Predicated region
    $region34: #{tpu_custom_call.1} parent=1 // pred_check
      _
    $region35: #{tpu_custom_call.1} parent=1 // pred_check_branch
      %81 = sbr.rel (0) target = $region37
    $region36: #{tpu_custom_call.1} parent=1 // pred_region
      %83 = dma.done [#allocation9], 2048
    $region37: #{tpu_custom_call.1} parent=1 // pred_fallthru
      _
    %v84 = vld [vmem:[#allocation2] sm:$0xff]
    %v85 = vld [vmem:[#allocation2 + $0x8] sm:$0xff]
    %v86 = vpack.c.bf16 %v85, %v84
    %v87 = vld [vmem:[#allocation5] sm:$0xff]
    %v88 = vld [vmem:[#allocation5 + $0x8] sm:$0xff]
    %v89 = vld [vmem:[#allocation5 + $0x10] sm:$0xff]
    %v90 = vld [vmem:[#allocation5 + $0x18] sm:$0xff]
    %v91 = vld [vmem:[#allocation5 + $0x20] sm:$0xff]
    %v92 = vld [vmem:[#allocation5 + $0x28] sm:$0xff]
    %v93 = vld [vmem:[#allocation5 + $0x30] sm:$0xff]
    %v94 = vld [vmem:[#allocation5 + $0x38] sm:$0xff]
    %v95 = vld [vmem:[#allocation5 + $0x40] sm:$0xff]
    %v96 = vld [vmem:[#allocation5 + $0x48] sm:$0xff]
    %v97 = vld [vmem:[#allocation5 + $0x50] sm:$0xff]
    %v98 = vld [vmem:[#allocation5 + $0x58] sm:$0xff]
    %v99 = vld [vmem:[#allocation5 + $0x60] sm:$0xff]
    %v100 = vld [vmem:[#allocation5 + $0x68] sm:$0xff]
    %v101 = vld [vmem:[#allocation5 + $0x70] sm:$0xff]
    %v102 = vld [vmem:[#allocation5 + $0x78] sm:$0xff]
    %v103 = vld [vmem:[#allocation7] sm:$0x3]
    %v105 = vperm.slane %v103, 0
    %v106 = vperm.slane %v103, 1
    %v125 = vunpack.c.l.b16 %v87
    %v126 = vunpack.c.h.b16 %v87
    %v127 = vunpack.c.l.b16 %v88
    %v128 = vunpack.c.h.b16 %v88
    %v129 = vunpack.c.l.b16 %v89
    %v130 = vunpack.c.h.b16 %v89
    %v131 = vunpack.c.l.b16 %v90
    %v132 = vunpack.c.h.b16 %v90
    %v133 = vunpack.c.l.b16 %v91
    %v134 = vunpack.c.h.b16 %v91
    %v135 = vunpack.c.l.b16 %v92
    %v136 = vunpack.c.h.b16 %v92
    %v137 = vunpack.c.l.b16 %v93
    %v138 = vunpack.c.h.b16 %v93
    %v139 = vunpack.c.l.b16 %v94
    %v140 = vunpack.c.h.b16 %v94
    %v141 = vunpack.c.l.b16 %v95
    %v142 = vunpack.c.h.b16 %v95
    %v143 = vunpack.c.l.b16 %v96
    %v144 = vunpack.c.h.b16 %v96
    %v145 = vunpack.c.l.b16 %v97
    %v146 = vunpack.c.h.b16 %v97
    %v147 = vunpack.c.l.b16 %v98
    %v148 = vunpack.c.h.b16 %v98
    %v149 = vunpack.c.l.b16 %v99
    %v150 = vunpack.c.h.b16 %v99
    %v151 = vunpack.c.l.b16 %v100
    %v152 = vunpack.c.h.b16 %v100
    %v153 = vunpack.c.l.b16 %v101
    %v154 = vunpack.c.h.b16 %v101
    %v155 = vunpack.c.l.b16 %v102
    %v156 = vunpack.c.h.b16 %v102
    %v157 = vpack.c.b16 %v127, %v125
    %v158 = vpack.c.b16 %v128, %v126
    %v159 = vpack.c.b16 %v131, %v129
    %v160 = vpack.c.b16 %v132, %v130
    %v161 = vpack.c.b16 %v135, %v133
    %v162 = vpack.c.b16 %v136, %v134
    %v163 = vpack.c.b16 %v139, %v137
    %v164 = vpack.c.b16 %v140, %v138
    %v165 = vpack.c.b16 %v143, %v141
    %v166 = vpack.c.b16 %v144, %v142
    %v167 = vpack.c.b16 %v147, %v145
    %v168 = vpack.c.b16 %v148, %v146
    %v169 = vpack.c.b16 %v151, %v149
    %v170 = vpack.c.b16 %v152, %v150
    %v171 = vpack.c.b16 %v155, %v153
    %v172 = vpack.c.b16 %v156, %v154
    %189 = vmatpush.bf16.msra.mxu0 %v171
    %190 = vmatpush.bf16.msra.mxu0 %v169
    %191 = vmatpush.bf16.msra.mxu0 %v167
    %192 = vmatpush.bf16.msra.mxu0 %v165
    %193 = vmatpush.bf16.msra.mxu0 %v163
    %194 = vmatpush.bf16.msra.mxu0 %v161
    %195 = vmatpush.bf16.msra.mxu0 %v159
    %196 = vmatpush.bf16.msra.mxu0 %v157
    %197 = vmatmul.bf16.gmra.mxu0 %v86
    %v198 = vpop.f32.mrf.mxu0
    %v199 = vadd.f32 %v105, %v198
    %v200 = vpop.f32.mrf.mxu0
    %v201 = vadd.f32 %v105, %v200
    %202 = vdwg.mxu0
    %203 = vmatpush.bf16.msra.mxu0 %v172
    %204 = vmatpush.bf16.msra.mxu0 %v170
    %205 = vmatpush.bf16.msra.mxu0 %v168
    %206 = vmatpush.bf16.msra.mxu0 %v166
    %207 = vmatpush.bf16.msra.mxu0 %v164
    %208 = vmatpush.bf16.msra.mxu0 %v162
    %209 = vmatpush.bf16.msra.mxu0 %v160
    %210 = vmatpush.bf16.msra.mxu0 %v158
    %211 = vmatmul.bf16.gmra.mxu0 %v86
    %v212 = vpop.f32.mrf.mxu0
    %v213 = vadd.f32 %v106, %v212
    %v214 = vpop.f32.mrf.mxu0
    %v215 = vadd.f32 %v106, %v214
    %216 = vdwg.mxu0
    %v217 = vmax.f32 %v199, 0.0
    %v218 = vmax.f32 %v213, 0.0
    %v219 = vmax.f32 %v201, 0.0
    %v220 = vmax.f32 %v215, 0.0
    %v221 = vadd.f32 %v217, %v218
    %222 = vadd.xlane.f32.xlu0 %v221
    %v223 = vpop.xlane.xlu0 %222
    %v224 = vadd.f32 %v219, %v220
    %225 = vadd.xlane.f32.xlu0 %v224
    %v226 = vpop.xlane.xlu0 %225
    %vm227 = vcmask 7168
    %228 = vst.msk [vmem:[%s6] sm:$0xff] %vm227, %v223
    %229 = vst.msk [vmem:[%s6 + $0x8] sm:$0xff] %vm227, %v226
    %v230 = vld [vmem:[%s4] sm:$0x1]
    %v231 = vpack.c.bf16 %v219, %v217
    %v232 = vpack.c.bf16 %v220, %v218
    %v233 = vld [vmem:[#allocation8] sm:$0xf]
    %v234 = vld [vmem:[#allocation8 + $0x4] sm:$0xf]
    %v235 = vld [vmem:[#allocation8 + $0x8] sm:$0xf]
    %v236 = vld [vmem:[#allocation8 + $0xc] sm:$0xf]
    %v237 = vld [vmem:[#allocation8 + $0x10] sm:$0xf]
    %v238 = vld [vmem:[#allocation8 + $0x14] sm:$0xf]
    %v239 = vld [vmem:[#allocation8 + $0x18] sm:$0xf]
    %v240 = vld [vmem:[#allocation8 + $0x1c] sm:$0xf]
    %v241 = vld [vmem:[#allocation8 + $0x20] sm:$0xf]
    %v242 = vld [vmem:[#allocation8 + $0x24] sm:$0xf]
    %v243 = vld [vmem:[#allocation8 + $0x28] sm:$0xf]
    %v244 = vld [vmem:[#allocation8 + $0x2c] sm:$0xf]
    %v245 = vld [vmem:[#allocation8 + $0x30] sm:$0xf]
    %v246 = vld [vmem:[#allocation8 + $0x34] sm:$0xf]
    %v247 = vld [vmem:[#allocation8 + $0x38] sm:$0xf]
    %v248 = vld [vmem:[#allocation8 + $0x3c] sm:$0xf]
    %v249 = vld [vmem:[#allocation8 + $0x40] sm:$0xf]
    %v250 = vld [vmem:[#allocation8 + $0x44] sm:$0xf]
    %v251 = vld [vmem:[#allocation8 + $0x48] sm:$0xf]
    %v252 = vld [vmem:[#allocation8 + $0x4c] sm:$0xf]
    %v253 = vld [vmem:[#allocation8 + $0x50] sm:$0xf]
    %v254 = vld [vmem:[#allocation8 + $0x54] sm:$0xf]
    %v255 = vld [vmem:[#allocation8 + $0x58] sm:$0xf]
    %v256 = vld [vmem:[#allocation8 + $0x5c] sm:$0xf]
    %v257 = vld [vmem:[#allocation8 + $0x60] sm:$0xf]
    %v258 = vld [vmem:[#allocation8 + $0x64] sm:$0xf]
    %v259 = vld [vmem:[#allocation8 + $0x68] sm:$0xf]
    %v260 = vld [vmem:[#allocation8 + $0x6c] sm:$0xf]
    %v261 = vld [vmem:[#allocation8 + $0x70] sm:$0xf]
    %v262 = vld [vmem:[#allocation8 + $0x74] sm:$0xf]
    %v263 = vld [vmem:[#allocation8 + $0x78] sm:$0xf]
    %v264 = vld [vmem:[#allocation8 + $0x7c] sm:$0xf]
    %v297 = vunpack.c.l.b16 %v233
    %v298 = vunpack.c.l.b16 %v234
    %v299 = vunpack.c.l.b16 %v235
    %v300 = vunpack.c.l.b16 %v236
    %v301 = vunpack.c.l.b16 %v237
    %v302 = vunpack.c.l.b16 %v238
    %v303 = vunpack.c.l.b16 %v239
    %v304 = vunpack.c.l.b16 %v240
    %v305 = vunpack.c.l.b16 %v241
    %v306 = vunpack.c.l.b16 %v242
    %v307 = vunpack.c.l.b16 %v243
    %v308 = vunpack.c.l.b16 %v244
    %v309 = vunpack.c.l.b16 %v245
    %v310 = vunpack.c.l.b16 %v246
    %v311 = vunpack.c.l.b16 %v247
    %v312 = vunpack.c.l.b16 %v248
    %v313 = vunpack.c.l.b16 %v249
    %v314 = vunpack.c.l.b16 %v250
    %v315 = vunpack.c.l.b16 %v251
    %v316 = vunpack.c.l.b16 %v252
    %v317 = vunpack.c.l.b16 %v253
    %v318 = vunpack.c.l.b16 %v254
    %v319 = vunpack.c.l.b16 %v255
    %v320 = vunpack.c.l.b16 %v256
    %v321 = vunpack.c.l.b16 %v257
    %v322 = vunpack.c.l.b16 %v258
    %v323 = vunpack.c.l.b16 %v259
    %v324 = vunpack.c.l.b16 %v260
    %v325 = vunpack.c.l.b16 %v261
    %v326 = vunpack.c.l.b16 %v262
    %v327 = vunpack.c.l.b16 %v263
    %v328 = vunpack.c.l.b16 %v264
    %v329 = vpack.c.b16 %v298, %v297
    %v330 = vpack.c.b16 %v300, %v299
    %v331 = vpack.c.b16 %v302, %v301
    %v332 = vpack.c.b16 %v304, %v303
    %v333 = vpack.c.b16 %v306, %v305
    %v334 = vpack.c.b16 %v308, %v307
    %v335 = vpack.c.b16 %v310, %v309
    %v336 = vpack.c.b16 %v312, %v311
    %v337 = vpack.c.b16 %v314, %v313
    %v338 = vpack.c.b16 %v316, %v315
    %v339 = vpack.c.b16 %v318, %v317
    %v340 = vpack.c.b16 %v320, %v319
    %v341 = vpack.c.b16 %v322, %v321
    %v342 = vpack.c.b16 %v324, %v323
    %v343 = vpack.c.b16 %v326, %v325
    %v344 = vpack.c.b16 %v328, %v327
    %361 = vmatpush.bf16.msra.mxu0 %v336
    %362 = vmatpush.bf16.msra.mxu0 %v335
    %363 = vmatpush.bf16.msra.mxu0 %v334
    %364 = vmatpush.bf16.msra.mxu0 %v333
    %365 = vmatpush.bf16.msra.mxu0 %v332
    %366 = vmatpush.bf16.msra.mxu0 %v331
    %367 = vmatpush.bf16.msra.mxu0 %v330
    %368 = vmatpush.bf16.msra.mxu0 %v329
    %369 = vmatmul.bf16.gmra.mxu0 %v231
    %v370 = vpop.f32.mrf.mxu0
    %v371 = vadd.f32 0.0, %v370
    %v372 = vpop.f32.mrf.mxu0
    %v373 = vadd.f32 0.0, %v372
    %374 = vdwg.mxu0
    %375 = vmatpush.bf16.msra.mxu0 %v344
    %376 = vmatpush.bf16.msra.mxu0 %v343
    %377 = vmatpush.bf16.msra.mxu0 %v342
    %378 = vmatpush.bf16.msra.mxu0 %v341
    %379 = vmatpush.bf16.msra.mxu0 %v340
    %380 = vmatpush.bf16.msra.mxu0 %v339
    %381 = vmatpush.bf16.msra.mxu0 %v338
    %382 = vmatpush.bf16.msra.mxu0 %v337
    %383 = vmatmul.bf16.gmra.mxu0 %v232
    %v384 = vpop.f32.mrf.mxu0
    %v385 = vadd.f32 %v371, %v384
    %v386 = vpop.f32.mrf.mxu0
    %v387 = vadd.f32 %v373, %v386
    %388 = vdwg.mxu0
    %v390 = vperm.slane %v230, 0
    %v392 = vadd.f32 %v390, %v385
    %v393 = vadd.f32 %v390, %v387
    %394 = vst [vmem:[#allocation10] sm:$0xff] %v392
    %395 = vst [vmem:[#allocation10 + $0x8] sm:$0xff] %v393
    // Predicated region
    $region38: #{tpu_custom_call.1} parent=1 // pred_check
      _
    $region39: #{tpu_custom_call.1} parent=1 // pred_check_branch
      %397 = sbr.rel (0) target = $region41
    $region40: #{tpu_custom_call.1} parent=1 // pred_region
      %399 = vsyncadd [#allocation4], 0
      %s400 = sshll.u32 [#allocation10], 4
      %s401 = int_to_ptr.vmem [resolvable:$true] %s400
      %s402 = sshll.u32 %s5, 4
      %s403 = int_to_ptr.hbm [resolvable:$true] %s402
      %408 = dma.vmem_to_hbm [thread:$0]  %s401, 256, %s403, [#allocation4], 128, 128, 8
    $region41: #{tpu_custom_call.1} parent=1 // pred_fallthru
      _
    // Predicated region
    $region42: #{tpu_custom_call.1} parent=1 // pred_check
      _
    $region43: #{tpu_custom_call.1} parent=1 // pred_check_branch
      %410 = sbr.rel (0) target = $region45
    $region44: #{tpu_custom_call.1} parent=1 // pred_region
      _
    $region45: #{tpu_custom_call.1} parent=1 // pred_fallthru
      _
    // Predicated region
    $region46: #{tpu_custom_call.1} parent=1 // pred_check
      _
    $region47: #{tpu_custom_call.1} parent=1 // pred_check_branch
      %412 = sbr.rel (0) target = $region49
    $region48: #{tpu_custom_call.1} parent=1 // pred_region
      %414 = dma.done [#allocation4], 256
    $region49: #{tpu_custom_call.1} parent=1 // pred_fallthru
      _
    // Predicated region
    $region50: #{tpu_custom_call.1} parent=1 // pred_check
      _
    $region51: #{tpu_custom_call.1} parent=1 // pred_check_branch
      %416 = sbr.rel (0) target = $region53
    $region52: #{tpu_custom_call.1} parent=1 // pred_region
      _
    $region53: #{tpu_custom_call.1} parent=1 // pred_fallthru
      _
    %417 = vsyncpa [#allocation3], 1
    %418 = vsyncpa [#allocation6], 1
    %419 = vsyncpa [#allocation9], 1
    %420 = vsyncpa [#allocation4], 1

</llo_original>
